<compile_context>
chip_gen: v7x
topology: tpu7x:2x2x1
jax: 0.10.0
libtpu: 0.0.40
codegen_flags: <defaults>
</compile_context>

<pallas_src>
import functools

import jax
import jax.numpy as jnp
import numpy as np
from jax.experimental import pallas as pl
from jax.experimental.pallas import tpu as pltpu


def _round_up(x, m):
    return (x + m - 1) // m * m


# ---------------------------------------------------------------------------
# Pass 1: fused projection   Wh_all = (X @ [W_0 | ... | W_{D-1}]) * norm
# ---------------------------------------------------------------------------
def _proj_kernel(x_ref, w_ref, norm_ref, wh_ref):
    wh = jnp.dot(x_ref[...], w_ref[...], preferred_element_type=jnp.float32)
    wh_ref[...] = (wh * norm_ref[...]).astype(wh_ref.dtype)


# ---------------------------------------------------------------------------
# Pass 2: aggregation   h_d = A_d @ Wh_d ; merge ; out = relu(merge * norm)
#   grid = (dst_row_tiles [parallel], src_tiles [arbitrary, reduction])
#   The output block is resident across the src axis and used directly as the
#   f32 accumulator (no extra scratch); one full-block += per src step keeps
#   the store lane-dense.
# ---------------------------------------------------------------------------
def _agg_kernel(adj_ref, wh_ref, norm_ref, out_ref, *, num_divisions, c_out,
                merge):
    s = pl.program_id(1)

    @pl.when(s == 0)
    def _():
        out_ref[...] = jnp.zeros_like(out_ref)

    if merge == "cat":
        # Each division owns a disjoint lane slab of the output; build the
        # whole concatenated slab in registers and accumulate once.
        parts = [
            jnp.dot(adj_ref[d],
                    wh_ref[:, d * c_out:(d + 1) * c_out],
                    preferred_element_type=jnp.float32)
            for d in range(num_divisions)
        ]
        out_ref[...] += jnp.concatenate(parts, axis=-1)
    else:  # 'mean' -> sum divisions here, fold 1/D into the final scale
        acc = jnp.dot(adj_ref[0], wh_ref[:, 0:c_out],
                      preferred_element_type=jnp.float32)
        for d in range(1, num_divisions):
            acc = acc + jnp.dot(adj_ref[d],
                                wh_ref[:, d * c_out:(d + 1) * c_out],
                                preferred_element_type=jnp.float32)
        out_ref[...] += acc

    @pl.when(s == pl.num_programs(1) - 1)
    def _():
        scale = norm_ref[...]
        if merge != "cat":
            scale = scale * (1.0 / num_divisions)
        out_ref[...] = jnp.maximum(out_ref[...] * scale, 0.0)


def geomgcn_single_channel(x, weights, adj, norm, merge="cat"):
    """Pallas implementation of GeomGCNSingleChannel.forward (eval mode).

    x       : [N, C_in] float32
    weights : [D, C_in, C_out] float32
    adj     : [D, N, N] float32 dense per-division adjacency (dst, src)
    norm    : [N, 1] float32
    """
    n, c_in = x.shape
    d, _, c_out = weights.shape
    # TODO(synk): training-mode dropout (in_feats_dropout) not implemented;
    # eval mode => identity.
    # NOTE: c_out that is a multiple of 128 keeps the per-division lane slabs
    # aligned (unmasked stores); other sizes are still correct, just slower.

    # ---- tile selection: keep the double-buffered bf16 adjacency block
    #      (dominant VMEM consumer) under ~32 MiB so the whole pipeline fits
    #      comfortably on every generation (v7x has 64 MiB physical VMEM). ----
    tile = 1024
    while 2 * 2 * d * tile * tile > (32 << 20) and tile > 128:
        tile //= 2
    tile = min(tile, _round_up(n, 128))
    n_pad = _round_up(n, tile)
    num_row_tiles = n_pad // tile
    num_src_tiles = n_pad // tile

    # ---- pad node dimension(s) to tile multiples (zero rows/cols are inert;
    #      explicit padding avoids garbage in partial input blocks) ----------
    if n_pad != n:
        x = jnp.pad(x, ((0, n_pad - n), (0, 0)))
        norm = jnp.pad(norm, ((0, n_pad - n), (0, 0)))
        adj = jnp.pad(adj, ((0, 0), (0, n_pad - n), (0, n_pad - n)))

    # ---- dtype: bf16 operands for the MXU (0/1 adjacency exact), f32 acc ----
    x_b = x.astype(jnp.bfloat16)
    w_all = jnp.transpose(weights, (1, 0, 2)).reshape(c_in, d * c_out)
    w_all = w_all.astype(jnp.bfloat16)
    adj_b = adj.astype(jnp.bfloat16)
    norm_f = norm.astype(jnp.float32)

    vmem_limit = 48 << 20  # explicit, with headroom; < v7x 64 MiB physical

    # -------------------- pass 1: fused projection --------------------------
    wh = pl.pallas_call(
        _proj_kernel,
        out_shape=jax.ShapeDtypeStruct((n_pad, d * c_out), jnp.bfloat16),
        grid_spec=pltpu.PrefetchScalarGridSpec(
            num_scalar_prefetch=0,
            grid=(num_row_tiles,),
            in_specs=[
                pl.BlockSpec((tile, c_in), lambda i: (i, 0)),       # X rows
                pl.BlockSpec((c_in, d * c_out), lambda i: (0, 0)),  # W_all
                pl.BlockSpec((tile, 1), lambda i: (i, 0)),          # norm rows
            ],
            out_specs=pl.BlockSpec((tile, d * c_out), lambda i: (i, 0)),
        ),
        compiler_params=pltpu.CompilerParams(
            dimension_semantics=("parallel",),
            vmem_limit_bytes=vmem_limit),
    )(x_b, w_all, norm_f)

    # -------------------- pass 2: tiled aggregation --------------------------
    out_cols = d * c_out if merge == "cat" else c_out
    agg = functools.partial(_agg_kernel, num_divisions=d, c_out=c_out,
                            merge=merge)
    out = pl.pallas_call(
        agg,
        out_shape=jax.ShapeDtypeStruct((n_pad, out_cols), jnp.float32),
        grid_spec=pltpu.PrefetchScalarGridSpec(
            num_scalar_prefetch=0,
            grid=(num_row_tiles, num_src_tiles),
            in_specs=[
                pl.BlockSpec((d, tile, tile), lambda i, s: (0, i, s)),  # A
                pl.BlockSpec((tile, d * c_out), lambda i, s: (s, 0)),   # Wh
                pl.BlockSpec((tile, 1), lambda i, s: (i, 0)),           # norm
            ],
            out_specs=pl.BlockSpec((tile, out_cols), lambda i, s: (i, 0)),
        ),
        compiler_params=pltpu.CompilerParams(
            dimension_semantics=("parallel", "arbitrary"),
            vmem_limit_bytes=vmem_limit),
    )(adj_b, wh, norm_f)

    return out[:n] if n_pad != n else out


def _reference(x, weights, adj, norm, merge):
    # Pure-JAX reference mirroring the kernel's bf16-operand / f32-accumulate
    # dtype pipeline.
    d = weights.shape[0]
    xb = x.astype(jnp.bfloat16).astype(jnp.float32)
    wb = weights.astype(jnp.bfloat16).astype(jnp.float32)
    ab = adj.astype(jnp.bfloat16).astype(jnp.float32)
    wh = jnp.einsum("nc,dco->dno", xb, wb) * norm[None]
    wh = wh.astype(jnp.bfloat16).astype(jnp.float32)
    h = jnp.einsum("dvu,duo->dvo", ab, wh)
    if merge == "cat":
        hn = jnp.concatenate([h[i] for i in range(d)], axis=-1)
    else:
        hn = jnp.mean(h, axis=0)
    return jax.nn.relu(hn * norm)


if __name__ == "__main__":
    key = jax.random.PRNGKey(0)
    k_x, k_w, k_e, k_div = jax.random.split(key, 4)

    N = 256        # number of graph nodes
    C_IN = 64      # in_channels
    C_OUT = 128    # out_channels
    D = 4          # num_divisions

    # Node features.
    x = jax.random.normal(k_x, (N, C_IN), dtype=jnp.float32)

    # Per-division linear weights, xavier_uniform-style.
    bound = float(np.sqrt(6.0 / (C_IN + C_OUT)))
    weights = jax.random.uniform(
        k_w, (D, C_IN, C_OUT), minval=-bound, maxval=bound, dtype=jnp.float32)

    # Synthetic graph: random edge mask, each edge assigned to one division.
    edge_mask = (jax.random.uniform(k_e, (N, N)) < 0.05).astype(jnp.float32)
    division = jax.random.randint(k_div, (N, N), 0, D)
    adj = jnp.stack(
        [edge_mask * (division == d).astype(jnp.float32) for d in range(D)],
        axis=0)  # [D, N, N], A[d, dst, src]

    # Node norm (e.g. 1/sqrt(in-degree)), shape [N, 1].
    deg = jnp.clip(edge_mask.sum(axis=1, keepdims=True), 1.0, None)
    norm = 1.0 / jnp.sqrt(deg)

    for merge in ("cat", "mean"):
        out = geomgcn_single_channel(x, weights, adj, norm, merge=merge)
        out = jax.block_until_ready(out)
        ref = _reference(x, weights, adj, norm, merge)
        np.testing.assert_allclose(np.asarray(out), np.asarray(ref),
                                   rtol=1e-2, atol=2e-3)

    print("KERNEL_OK")
</pallas_src>

<mosaic_0001>
module attributes {stable_mosaic.version = 11 : i64} {
  func.func @_proj_kernel(%arg0: i32, %arg1: memref<256x64xbf16, #tpu.memory_space<vmem>>, %arg2: memref<64x512xbf16, #tpu.memory_space<vmem>>, %arg3: memref<256x1xf32, #tpu.memory_space<vmem>>, %arg4: memref<256x512xbf16, #tpu.memory_space<vmem>>) attributes {dimension_semantics = [#tpu.dimension_semantics<parallel>], iteration_bounds = array<i64: 1>, scalar_prefetch = 0 : i64, scratch_operands = 0 : i64, tpu.core_type = #tpu.core_type<tc>, window_params = [{transform_indices = @transform_0, window_bounds = array<i64: 256, 64>}, {pipeline_mode = #tpu.pipeline_mode<synchronous>, transform_indices = @transform_1, window_bounds = array<i64: 64, 512>}, {transform_indices = @transform_2, window_bounds = array<i64: 256, 1>}, {transform_indices = @transform_3, window_bounds = array<i64: 256, 512>}]} {
    %c0 = arith.constant 0 : index
    %c0_0 = arith.constant 0 : index
    %0 = vector.load %arg1[%c0, %c0_0] : memref<256x64xbf16, #tpu.memory_space<vmem>>, vector<256x64xbf16>
    %c0_1 = arith.constant 0 : index
    %c0_2 = arith.constant 0 : index
    %1 = vector.load %arg2[%c0_1, %c0_2] : memref<64x512xbf16, #tpu.memory_space<vmem>>, vector<64x512xbf16>
    %cst = arith.constant dense<0.000000e+00> : vector<256x512xf32>
    %2 = tpu.matmul %0, %1, %cst {dimension_numbers = #tpu.dot_dimension_numbers<[1], [0], [0], [1], [0, 0, 1, 1], [], []>} : vector<256x64xbf16>, vector<64x512xbf16>, vector<256x512xf32> -> vector<256x512xf32>
    %c0_3 = arith.constant 0 : index
    %c0_4 = arith.constant 0 : index
    %3 = vector.load %arg3[%c0_3, %c0_4] : memref<256x1xf32, #tpu.memory_space<vmem>>, vector<256x1xf32>
    %4 = vector.broadcast %3 : vector<256x1xf32> to vector<256x512xf32>
    %5 = arith.mulf %2, %4 : vector<256x512xf32>
    %6 = arith.truncf %5 : vector<256x512xf32> to vector<256x512xbf16>
    %c0_5 = arith.constant 0 : index
    %c0_6 = arith.constant 0 : index
    %7 = vector.load %arg4[%c0_5, %c0_6] : memref<256x512xbf16, #tpu.memory_space<vmem>>, vector<256x512xbf16>
    tpu.vector_store %arg4[%c0_5, %c0_6], %6 {strides = array<i32>} : memref<256x512xbf16, #tpu.memory_space<vmem>>, vector<256x512xbf16>,
    return
  }
  func.func @transform_0(%arg0: i32) -> (i32, i32) {
    %c0_i32 = arith.constant 0 : i32
    %c0_i32_0 = arith.constant 0 : i32
    return %arg0, %c0_i32 : i32, i32
  }
  func.func @transform_1(%arg0: i32) -> (i32, i32) {
    %c0_i32 = arith.constant 0 : i32
    %c0_i32_0 = arith.constant 0 : i32
    %c0_i32_1 = arith.constant 0 : i32
    return %c0_i32, %c0_i32_0 : i32, i32
  }
  func.func @transform_2(%arg0: i32) -> (i32, i32) {
    %c0_i32 = arith.constant 0 : i32
    %c0_i32_0 = arith.constant 0 : i32
    return %arg0, %c0_i32 : i32, i32
  }
  func.func @transform_3(%arg0: i32) -> (i32, i32) {
    %c0_i32 = arith.constant 0 : i32
    %c0_i32_0 = arith.constant 0 : i32
    return %arg0, %c0_i32 : i32, i32
  }
}

</mosaic_0001>

<llo_original>
// kernel: tpu_custom_call.1
$region0: #{tpu_custom_call.1}
  #allocation0 [shape = 'u32[]', space=smem, size = 0x4, offset = 0x4, fixed_abs, tag = 'smem constant byte address 0x4 - core index']
  #allocation1 [shape = 'u32[144,128]{1,0:T(1,128)}', space=vmem, size = 0x12000, scoped, tag = 'internal scratch']
  %s0 = inlined_call_operand.vmem [shape: bf16[256,64], index: 0, kind: input, shape index: {}]
  %s1 = inlined_call_operand.vmem [shape: bf16[64,512], index: 1, kind: input, shape index: {}]
  %s2 = inlined_call_operand.vmem [shape: f32[256,1], index: 2, kind: input, shape index: {}]
  %s3 = inlined_call_operand.hbm [shape: bf16[256,512], index: 3, kind: output, shape index: {}]
  %s4 = sld [smem:[#allocation0]]
  $region22: #{tpu_custom_call.1} parent=0
    _
  %s6 = ssub.s32 1, %s4
  %s7 = scalar_select 0, %s6, %s4
  $region1: #{tpu_custom_call.1} parent=0
    #allocation2 [shape = 'u8[262144]{0}', space=vmem, size = 0x40000, scoped, tag = 'output window, operand 0, single buffered']
    #allocation3 [shape = 's32[1]{0}', space=sflag, size = 0x4, scoped, tag = 'scoped memory for tpu_custom_call.1']
    %8 = vsyncpa [#allocation3], 0
    // Predicated region
    $region2: #{tpu_custom_call.1} parent=1 // pred_check
      _
    $region3: #{tpu_custom_call.1} parent=1 // pred_check_branch
      %10 = sbr.rel (0) target = $region5
    $region4: #{tpu_custom_call.1} parent=1 // pred_region
      _
    $region5: #{tpu_custom_call.1} parent=1 // pred_fallthru
      _
    // Predicated region
    $region6: #{tpu_custom_call.1} parent=1 // pred_check
      _
    $region7: #{tpu_custom_call.1} parent=1 // pred_check_branch
      %12 = sbr.rel (0) target = $region9
    $region8: #{tpu_custom_call.1} parent=1 // pred_region
      _
    $region9: #{tpu_custom_call.1} parent=1 // pred_fallthru
      _
    // Predicated region
    $region10: #{tpu_custom_call.1} parent=1 // pred_check
      _
    $region11: #{tpu_custom_call.1} parent=1 // pred_check_branch
      %14 = sbr.rel (0) target = $region13
    $region12: #{tpu_custom_call.1} parent=1 // pred_region
      _
    $region13: #{tpu_custom_call.1} parent=1 // pred_fallthru
      _
    %v16 = vld [vmem:[%s0] sm:$0xf]
    %v17 = vld [vmem:[%s0 + $0x4] sm:$0xf]
    %v18 = vld [vmem:[%s0 + $0x8] sm:$0xf]
    %v19 = vld [vmem:[%s0 + $0xc] sm:$0xf]
    %v20 = vld [vmem:[%s0 + $0x10] sm:$0xf]
    %v21 = vld [vmem:[%s0 + $0x14] sm:$0xf]
    %v22 = vld [vmem:[%s0 + $0x18] sm:$0xf]
    %v23 = vld [vmem:[%s0 + $0x1c] sm:$0xf]
    %v24 = vld [vmem:[%s0 + $0x20] sm:$0xf]
    %v25 = vld [vmem:[%s0 + $0x24] sm:$0xf]
    %v26 = vld [vmem:[%s0 + $0x28] sm:$0xf]
    %v27 = vld [vmem:[%s0 + $0x2c] sm:$0xf]
    %v28 = vld [vmem:[%s0 + $0x30] sm:$0xf]
    %v29 = vld [vmem:[%s0 + $0x34] sm:$0xf]
    %v30 = vld [vmem:[%s0 + $0x38] sm:$0xf]
    %v31 = vld [vmem:[%s0 + $0x3c] sm:$0xf]
    %v32 = vld [vmem:[%s0 + $0x40] sm:$0xf]
    %v33 = vld [vmem:[%s0 + $0x44] sm:$0xf]
    %v34 = vld [vmem:[%s0 + $0x48] sm:$0xf]
    %v35 = vld [vmem:[%s0 + $0x4c] sm:$0xf]
    %v36 = vld [vmem:[%s0 + $0x50] sm:$0xf]
    %v37 = vld [vmem:[%s0 + $0x54] sm:$0xf]
    %v38 = vld [vmem:[%s0 + $0x58] sm:$0xf]
    %v39 = vld [vmem:[%s0 + $0x5c] sm:$0xf]
    %v40 = vld [vmem:[%s0 + $0x60] sm:$0xf]
    %v41 = vld [vmem:[%s0 + $0x64] sm:$0xf]
    %v42 = vld [vmem:[%s0 + $0x68] sm:$0xf]
    %v43 = vld [vmem:[%s0 + $0x6c] sm:$0xf]
    %v44 = vld [vmem:[%s0 + $0x70] sm:$0xf]
    %v45 = vld [vmem:[%s0 + $0x74] sm:$0xf]
    %v46 = vld [vmem:[%s0 + $0x78] sm:$0xf]
    %v47 = vld [vmem:[%s0 + $0x7c] sm:$0xf]
    %v48 = vld [vmem:[%s1] sm:$0xff]
    %v49 = vld [vmem:[%s1 + $0x8] sm:$0xff]
    %v50 = vld [vmem:[%s1 + $0x10] sm:$0xff]
    %v51 = vld [vmem:[%s1 + $0x18] sm:$0xff]
    %v52 = vld [vmem:[%s1 + $0x20] sm:$0xff]
    %v53 = vld [vmem:[%s1 + $0x28] sm:$0xff]
    %v54 = vld [vmem:[%s1 + $0x30] sm:$0xff]
    %v55 = vld [vmem:[%s1 + $0x38] sm:$0xff]
    %v56 = vld [vmem:[%s1 + $0x40] sm:$0xff]
    %v57 = vld [vmem:[%s1 + $0x48] sm:$0xff]
    %v58 = vld [vmem:[%s1 + $0x50] sm:$0xff]
    %v59 = vld [vmem:[%s1 + $0x58] sm:$0xff]
    %v60 = vld [vmem:[%s1 + $0x60] sm:$0xff]
    %v61 = vld [vmem:[%s1 + $0x68] sm:$0xff]
    %v62 = vld [vmem:[%s1 + $0x70] sm:$0xff]
    %v63 = vld [vmem:[%s1 + $0x78] sm:$0xff]
    %v96 = vunpack.c.l.b16 %v16
    %v97 = vunpack.c.l.b16 %v17
    %v98 = vunpack.c.l.b16 %v18
    %v99 = vunpack.c.l.b16 %v19
    %v100 = vunpack.c.l.b16 %v20
    %v101 = vunpack.c.l.b16 %v21
    %v102 = vunpack.c.l.b16 %v22
    %v103 = vunpack.c.l.b16 %v23
    %v104 = vunpack.c.l.b16 %v24
    %v105 = vunpack.c.l.b16 %v25
    %v106 = vunpack.c.l.b16 %v26
    %v107 = vunpack.c.l.b16 %v27
    %v108 = vunpack.c.l.b16 %v28
    %v109 = vunpack.c.l.b16 %v29
    %v110 = vunpack.c.l.b16 %v30
    %v111 = vunpack.c.l.b16 %v31
    %v112 = vunpack.c.l.b16 %v32
    %v113 = vunpack.c.l.b16 %v33
    %v114 = vunpack.c.l.b16 %v34
    %v115 = vunpack.c.l.b16 %v35
    %v116 = vunpack.c.l.b16 %v36
    %v117 = vunpack.c.l.b16 %v37
    %v118 = vunpack.c.l.b16 %v38
    %v119 = vunpack.c.l.b16 %v39
    %v120 = vunpack.c.l.b16 %v40
    %v121 = vunpack.c.l.b16 %v41
    %v122 = vunpack.c.l.b16 %v42
    %v123 = vunpack.c.l.b16 %v43
    %v124 = vunpack.c.l.b16 %v44
    %v125 = vunpack.c.l.b16 %v45
    %v126 = vunpack.c.l.b16 %v46
    %v127 = vunpack.c.l.b16 %v47
    %v128 = vpack.c.b16 %v97, %v96
    %v129 = vpack.c.b16 %v99, %v98
    %v130 = vpack.c.b16 %v101, %v100
    %v131 = vpack.c.b16 %v103, %v102
    %v132 = vpack.c.b16 %v105, %v104
    %v133 = vpack.c.b16 %v107, %v106
    %v134 = vpack.c.b16 %v109, %v108
    %v135 = vpack.c.b16 %v111, %v110
    %v136 = vpack.c.b16 %v113, %v112
    %v137 = vpack.c.b16 %v115, %v114
    %v138 = vpack.c.b16 %v117, %v116
    %v139 = vpack.c.b16 %v119, %v118
    %v140 = vpack.c.b16 %v121, %v120
    %v141 = vpack.c.b16 %v123, %v122
    %v142 = vpack.c.b16 %v125, %v124
    %v143 = vpack.c.b16 %v127, %v126
    %v160 = vunpack.c.l.b16 %v48
    %v161 = vunpack.c.h.b16 %v48
    %v162 = vunpack.c.l.b16 %v49
    %v163 = vunpack.c.h.b16 %v49
    %v164 = vunpack.c.l.b16 %v50
    %v165 = vunpack.c.h.b16 %v50
    %v166 = vunpack.c.l.b16 %v51
    %v167 = vunpack.c.h.b16 %v51
    %v168 = vunpack.c.l.b16 %v52
    %v169 = vunpack.c.h.b16 %v52
    %v170 = vunpack.c.l.b16 %v53
    %v171 = vunpack.c.h.b16 %v53
    %v172 = vunpack.c.l.b16 %v54
    %v173 = vunpack.c.h.b16 %v54
    %v174 = vunpack.c.l.b16 %v55
    %v175 = vunpack.c.h.b16 %v55
    %v176 = vunpack.c.l.b16 %v56
    %v177 = vunpack.c.h.b16 %v56
    %v178 = vunpack.c.l.b16 %v57
    %v179 = vunpack.c.h.b16 %v57
    %v180 = vunpack.c.l.b16 %v58
    %v181 = vunpack.c.h.b16 %v58
    %v182 = vunpack.c.l.b16 %v59
    %v183 = vunpack.c.h.b16 %v59
    %v184 = vunpack.c.l.b16 %v60
    %v185 = vunpack.c.h.b16 %v60
    %v186 = vunpack.c.l.b16 %v61
    %v187 = vunpack.c.h.b16 %v61
    %v188 = vunpack.c.l.b16 %v62
    %v189 = vunpack.c.h.b16 %v62
    %v190 = vunpack.c.l.b16 %v63
    %v191 = vunpack.c.h.b16 %v63
    %v192 = vpack.c.b16 %v164, %v160
    %v193 = vpack.c.b16 %v165, %v161
    %v194 = vpack.c.b16 %v166, %v162
    %v195 = vpack.c.b16 %v167, %v163
    %v196 = vpack.c.b16 %v172, %v168
    %v197 = vpack.c.b16 %v173, %v169
    %v198 = vpack.c.b16 %v174, %v170
    %v199 = vpack.c.b16 %v175, %v171
    %v200 = vpack.c.b16 %v180, %v176
    %v201 = vpack.c.b16 %v181, %v177
    %v202 = vpack.c.b16 %v182, %v178
    %v203 = vpack.c.b16 %v183, %v179
    %v204 = vpack.c.b16 %v188, %v184
    %v205 = vpack.c.b16 %v189, %v185
    %v206 = vpack.c.b16 %v190, %v186
    %v207 = vpack.c.b16 %v191, %v187
    %vm224 = vcmask 523264
    %v226 = vsel %vm224, %v128, 0
    %v229 = vsel %vm224, %v129, 0
    %v232 = vsel %vm224, %v130, 0
    %v235 = vsel %vm224, %v131, 0
    %v238 = vsel %vm224, %v132, 0
    %v241 = vsel %vm224, %v133, 0
    %v244 = vsel %vm224, %v134, 0
    %v247 = vsel %vm224, %v135, 0
    %v250 = vsel %vm224, %v136, 0
    %v253 = vsel %vm224, %v137, 0
    %v256 = vsel %vm224, %v138, 0
    %v259 = vsel %vm224, %v139, 0
    %v262 = vsel %vm224, %v140, 0
    %v265 = vsel %vm224, %v141, 0
    %v268 = vsel %vm224, %v142, 0
    %v271 = vsel %vm224, %v143, 0
    %273 = vmatprep.subr.bf16.mxu0 %v193
    %274 = vmatpush1.bf16.msra.mxu0 %v192
    %275 = vmatprep.subr.bf16.mxu0 %v197
    %276 = vmatpush1.bf16.msra.mxu0 %v196
    %277 = vmatprep.subr.bf16.mxu0 %v201
    %278 = vmatpush1.bf16.msra.mxu0 %v200
    %279 = vmatprep.subr.bf16.mxu0 %v205
    %280 = vmatpush1.bf16.msra.mxu0 %v204
    %281 = vmatprep.subr.bf16.mxu0 0
    %282 = vmatpush1.bf16.msra.mxu0 0
    %283 = vmatprep.subr.bf16.mxu0 0
    %284 = vmatpush1.bf16.msra.mxu0 0
    %285 = vmatprep.subr.bf16.mxu0 0
    %286 = vmatpush1.bf16.msra.mxu0 0
    %287 = vmatprep.subr.bf16.mxu0 0
    %288 = vmatpush1.bf16.msra.mxu0 0
    %289 = vmatprep.subr.bf16.mxu0 0
    %290 = vmatpush1.bf16.msra.mxu0 0
    %291 = vmatprep.subr.bf16.mxu0 0
    %292 = vmatpush1.bf16.msra.mxu0 0
    %293 = vmatprep.subr.bf16.mxu0 0
    %294 = vmatpush1.bf16.msra.mxu0 0
    %295 = vmatprep.subr.bf16.mxu0 0
    %296 = vmatpush1.bf16.msra.mxu0 0
    %297 = vmatprep.subr.bf16.mxu0 0
    %298 = vmatpush1.bf16.msra.mxu0 0
    %299 = vmatprep.subr.bf16.mxu0 0
    %300 = vmatpush1.bf16.msra.mxu0 0
    %301 = vmatprep.subr.bf16.mxu0 0
    %302 = vmatpush1.bf16.msra.mxu0 0
    %303 = vmatprep.subr.bf16.mxu0 0
    %304 = vmatpush1.bf16.msra.mxu0 0
    %305 = vmatprep.mubr.bf16.mxu0 0
    %306 = vmatmul.mubr.bf16.gmra.mrb[0].mxu0 %v226
    %v307 = vpop.f32.mrb[0].mxu0
    %v308 = vadd.f32 0.0, %v307
    %v309 = vpop.f32.mrb[0].mxu0
    %v310 = vadd.f32 0.0, %v309
    %v311 = vpop.f32.mrb[0].mxu0
    %v312 = vadd.f32 0.0, %v311
    %v313 = vpop.f32.mrb[0].mxu0
    %v314 = vadd.f32 0.0, %v313
    %315 = vmatprep.mubr.bf16.mxu0 0
    %316 = vmatmul.mubr.bf16.gmra.mrb[0].mxu0 %v229
    %v317 = vpop.f32.mrb[0].mxu0
    %v318 = vadd.f32 0.0, %v317
    %v319 = vpop.f32.mrb[0].mxu0
    %v320 = vadd.f32 0.0, %v319
    %v321 = vpop.f32.mrb[0].mxu0
    %v322 = vadd.f32 0.0, %v321
    %v323 = vpop.f32.mrb[0].mxu0
    %v324 = vadd.f32 0.0, %v323
    %325 = vmatprep.mubr.bf16.mxu0 0
    %326 = vmatmul.mubr.bf16.gmra.mrb[0].mxu0 %v232
    %v327 = vpop.f32.mrb[0].mxu0
    %v328 = vadd.f32 0.0, %v327
    %v329 = vpop.f32.mrb[0].mxu0
    %v330 = vadd.f32 0.0, %v329
    %v331 = vpop.f32.mrb[0].mxu0
    %v332 = vadd.f32 0.0, %v331
    %v333 = vpop.f32.mrb[0].mxu0
    %v334 = vadd.f32 0.0, %v333
    %335 = vmatprep.mubr.bf16.mxu0 0
    %336 = vmatmul.mubr.bf16.gmra.mrb[0].mxu0 %v235
    %v337 = vpop.f32.mrb[0].mxu0
    %v338 = vadd.f32 0.0, %v337
    %v339 = vpop.f32.mrb[0].mxu0
    %v340 = vadd.f32 0.0, %v339
    %v341 = vpop.f32.mrb[0].mxu0
    %v342 = vadd.f32 0.0, %v341
    %v343 = vpop.f32.mrb[0].mxu0
    %v344 = vadd.f32 0.0, %v343
    %345 = vmatprep.mubr.bf16.mxu0 0
    %346 = vmatmul.mubr.bf16.gmra.mrb[0].mxu0 %v238
    %v347 = vpop.f32.mrb[0].mxu0
    %v348 = vadd.f32 0.0, %v347
    %v349 = vpop.f32.mrb[0].mxu0
    %v350 = vadd.f32 0.0, %v349
    %v351 = vpop.f32.mrb[0].mxu0
    %v352 = vadd.f32 0.0, %v351
    %v353 = vpop.f32.mrb[0].mxu0
    %v354 = vadd.f32 0.0, %v353
    %355 = vmatprep.mubr.bf16.mxu0 0
    %356 = vmatmul.mubr.bf16.gmra.mrb[0].mxu0 %v241
    %v357 = vpop.f32.mrb[0].mxu0
    %v358 = vadd.f32 0.0, %v357
    %v359 = vpop.f32.mrb[0].mxu0
    %v360 = vadd.f32 0.0, %v359
    %v361 = vpop.f32.mrb[0].mxu0
    %v362 = vadd.f32 0.0, %v361
    %v363 = vpop.f32.mrb[0].mxu0
    %v364 = vadd.f32 0.0, %v363
    %365 = vmatprep.mubr.bf16.mxu0 0
    %366 = vmatmul.mubr.bf16.gmra.mrb[0].mxu0 %v244
    %v367 = vpop.f32.mrb[0].mxu0
    %v368 = vadd.f32 0.0, %v367
    %v369 = vpop.f32.mrb[0].mxu0
    %v370 = vadd.f32 0.0, %v369
    %v371 = vpop.f32.mrb[0].mxu0
    %v372 = vadd.f32 0.0, %v371
    %v373 = vpop.f32.mrb[0].mxu0
    %v374 = vadd.f32 0.0, %v373
    %375 = vmatprep.mubr.bf16.mxu0 0
    %376 = vmatmul.mubr.bf16.gmra.mrb[0].mxu0 %v247
    %v377 = vpop.f32.mrb[0].mxu0
    %v378 = vadd.f32 0.0, %v377
    %v379 = vpop.f32.mrb[0].mxu0
    %v380 = vadd.f32 0.0, %v379
    %v381 = vpop.f32.mrb[0].mxu0
    %v382 = vadd.f32 0.0, %v381
    %v383 = vpop.f32.mrb[0].mxu0
    %v384 = vadd.f32 0.0, %v383
    %385 = vmatprep.mubr.bf16.mxu0 0
    %386 = vmatmul.mubr.bf16.gmra.mrb[0].mxu0 %v250
    %v387 = vpop.f32.mrb[0].mxu0
    %v388 = vadd.f32 0.0, %v387
    %v389 = vpop.f32.mrb[0].mxu0
    %v390 = vadd.f32 0.0, %v389
    %v391 = vpop.f32.mrb[0].mxu0
    %v392 = vadd.f32 0.0, %v391
    %v393 = vpop.f32.mrb[0].mxu0
    %v394 = vadd.f32 0.0, %v393
    %395 = vmatprep.mubr.bf16.mxu0 0
    %396 = vmatmul.mubr.bf16.gmra.mrb[0].mxu0 %v253
    %v397 = vpop.f32.mrb[0].mxu0
    %v398 = vadd.f32 0.0, %v397
    %v399 = vpop.f32.mrb[0].mxu0
    %v400 = vadd.f32 0.0, %v399
    %v401 = vpop.f32.mrb[0].mxu0
    %v402 = vadd.f32 0.0, %v401
    %v403 = vpop.f32.mrb[0].mxu0
    %v404 = vadd.f32 0.0, %v403
    %405 = vmatprep.mubr.bf16.mxu0 0
    %406 = vmatmul.mubr.bf16.gmra.mrb[0].mxu0 %v256
    %v407 = vpop.f32.mrb[0].mxu0
    %v408 = vadd.f32 0.0, %v407
    %v409 = vpop.f32.mrb[0].mxu0
    %v410 = vadd.f32 0.0, %v409
    %v411 = vpop.f32.mrb[0].mxu0
    %v412 = vadd.f32 0.0, %v411
    %v413 = vpop.f32.mrb[0].mxu0
    %v414 = vadd.f32 0.0, %v413
    %415 = vmatprep.mubr.bf16.mxu0 0
    %416 = vmatmul.mubr.bf16.gmra.mrb[0].mxu0 %v259
    %v417 = vpop.f32.mrb[0].mxu0
    %v418 = vadd.f32 0.0, %v417
    %v419 = vpop.f32.mrb[0].mxu0
    %v420 = vadd.f32 0.0, %v419
    %v421 = vpop.f32.mrb[0].mxu0
    %v422 = vadd.f32 0.0, %v421
    %v423 = vpop.f32.mrb[0].mxu0
    %v424 = vadd.f32 0.0, %v423
    %425 = vmatprep.mubr.bf16.mxu0 0
    %426 = vmatmul.mubr.bf16.gmra.mrb[0].mxu0 %v262
    %v427 = vpop.f32.mrb[0].mxu0
    %v428 = vadd.f32 0.0, %v427
    %v429 = vpop.f32.mrb[0].mxu0
    %v430 = vadd.f32 0.0, %v429
    %v431 = vpop.f32.mrb[0].mxu0
    %v432 = vadd.f32 0.0, %v431
    %v433 = vpop.f32.mrb[0].mxu0
    %v434 = vadd.f32 0.0, %v433
    %435 = vmatprep.mubr.bf16.mxu0 0
    %436 = vmatmul.mubr.bf16.gmra.mrb[0].mxu0 %v265
    %v437 = vpop.f32.mrb[0].mxu0
    %v438 = vadd.f32 0.0, %v437
    %v439 = vpop.f32.mrb[0].mxu0
    %v440 = vadd.f32 0.0, %v439
    %v441 = vpop.f32.mrb[0].mxu0
    %v442 = vadd.f32 0.0, %v441
    %v443 = vpop.f32.mrb[0].mxu0
    %v444 = vadd.f32 0.0, %v443
    %445 = vmatprep.mubr.bf16.mxu0 0
    %446 = vmatmul.mubr.bf16.gmra.mrb[0].mxu0 %v268
    %v447 = vpop.f32.mrb[0].mxu0
    %v448 = vadd.f32 0.0, %v447
    %v449 = vpop.f32.mrb[0].mxu0
    %v450 = vadd.f32 0.0, %v449
    %v451 = vpop.f32.mrb[0].mxu0
    %v452 = vadd.f32 0.0, %v451
    %v453 = vpop.f32.mrb[0].mxu0
    %v454 = vadd.f32 0.0, %v453
    %455 = vmatprep.mubr.bf16.mxu0 0
    %456 = vmatmul.mubr.bf16.gmra.mrb[0].mxu0 %v271
    %v457 = vpop.f32.mrb[0].mxu0
    %v458 = vadd.f32 0.0, %v457
    %v459 = vpop.f32.mrb[0].mxu0
    %v460 = vadd.f32 0.0, %v459
    %v461 = vpop.f32.mrb[0].mxu0
    %v462 = vadd.f32 0.0, %v461
    %v463 = vpop.f32.mrb[0].mxu0
    %v464 = vadd.f32 0.0, %v463
    %465 = vdwg.mxu0
    %466 = vmatprep.subr.bf16.mxu0 %v195
    %467 = vmatpush1.bf16.msra.mxu0 %v194
    %468 = vmatprep.subr.bf16.mxu0 %v199
    %469 = vmatpush1.bf16.msra.mxu0 %v198
    %470 = vmatprep.subr.bf16.mxu0 %v203
    %471 = vmatpush1.bf16.msra.mxu0 %v202
    %472 = vmatprep.subr.bf16.mxu0 %v207
    %473 = vmatpush1.bf16.msra.mxu0 %v206
    %474 = vmatprep.subr.bf16.mxu0 0
    %475 = vmatpush1.bf16.msra.mxu0 0
    %476 = vmatprep.subr.bf16.mxu0 0
    %477 = vmatpush1.bf16.msra.mxu0 0
    %478 = vmatprep.subr.bf16.mxu0 0
    %479 = vmatpush1.bf16.msra.mxu0 0
    %480 = vmatprep.subr.bf16.mxu0 0
    %481 = vmatpush1.bf16.msra.mxu0 0
    %482 = vmatprep.subr.bf16.mxu0 0
    %483 = vmatpush1.bf16.msra.mxu0 0
    %484 = vmatprep.subr.bf16.mxu0 0
    %485 = vmatpush1.bf16.msra.mxu0 0
    %486 = vmatprep.subr.bf16.mxu0 0
    %487 = vmatpush1.bf16.msra.mxu0 0
    %488 = vmatprep.subr.bf16.mxu0 0
    %489 = vmatpush1.bf16.msra.mxu0 0
    %490 = vmatprep.subr.bf16.mxu0 0
    %491 = vmatpush1.bf16.msra.mxu0 0
    %492 = vmatprep.subr.bf16.mxu0 0
    %493 = vmatpush1.bf16.msra.mxu0 0
    %494 = vmatprep.subr.bf16.mxu0 0
    %495 = vmatpush1.bf16.msra.mxu0 0
    %496 = vmatprep.subr.bf16.mxu0 0
    %497 = vmatpush1.bf16.msra.mxu0 0
    %498 = vmatprep.mubr.bf16.mxu0 0
    %499 = vmatmul.mubr.bf16.gmra.mrb[0].mxu0 %v226
    %v500 = vpop.f32.mrb[0].mxu0
    %v501 = vadd.f32 0.0, %v500
    %v502 = vpop.f32.mrb[0].mxu0
    %v503 = vadd.f32 0.0, %v502
    %v504 = vpop.f32.mrb[0].mxu0
    %v505 = vadd.f32 0.0, %v504
    %v506 = vpop.f32.mrb[0].mxu0
    %v507 = vadd.f32 0.0, %v506
    %508 = vmatprep.mubr.bf16.mxu0 0
    %509 = vmatmul.mubr.bf16.gmra.mrb[0].mxu0 %v229
    %v510 = vpop.f32.mrb[0].mxu0
    %v511 = vadd.f32 0.0, %v510
    %v512 = vpop.f32.mrb[0].mxu0
    %v513 = vadd.f32 0.0, %v512
    %v514 = vpop.f32.mrb[0].mxu0
    %v515 = vadd.f32 0.0, %v514
    %v516 = vpop.f32.mrb[0].mxu0
    %v517 = vadd.f32 0.0, %v516
    %518 = vmatprep.mubr.bf16.mxu0 0
    %519 = vmatmul.mubr.bf16.gmra.mrb[0].mxu0 %v232
    %v520 = vpop.f32.mrb[0].mxu0
    %v521 = vadd.f32 0.0, %v520
    %v522 = vpop.f32.mrb[0].mxu0
    %v523 = vadd.f32 0.0, %v522
    %v524 = vpop.f32.mrb[0].mxu0
    %v525 = vadd.f32 0.0, %v524
    %v526 = vpop.f32.mrb[0].mxu0
    %v527 = vadd.f32 0.0, %v526
    %528 = vmatprep.mubr.bf16.mxu0 0
    %529 = vmatmul.mubr.bf16.gmra.mrb[0].mxu0 %v235
    %v530 = vpop.f32.mrb[0].mxu0
    %v531 = vadd.f32 0.0, %v530
    %v532 = vpop.f32.mrb[0].mxu0
    %v533 = vadd.f32 0.0, %v532
    %v534 = vpop.f32.mrb[0].mxu0
    %v535 = vadd.f32 0.0, %v534
    %v536 = vpop.f32.mrb[0].mxu0
    %v537 = vadd.f32 0.0, %v536
    %538 = vmatprep.mubr.bf16.mxu0 0
    %539 = vmatmul.mubr.bf16.gmra.mrb[0].mxu0 %v238
    %v540 = vpop.f32.mrb[0].mxu0
    %v541 = vadd.f32 0.0, %v540
    %v542 = vpop.f32.mrb[0].mxu0
    %v543 = vadd.f32 0.0, %v542
    %v544 = vpop.f32.mrb[0].mxu0
    %v545 = vadd.f32 0.0, %v544
    %v546 = vpop.f32.mrb[0].mxu0
    %v547 = vadd.f32 0.0, %v546
    %548 = vmatprep.mubr.bf16.mxu0 0
    %549 = vmatmul.mubr.bf16.gmra.mrb[0].mxu0 %v241
    %v550 = vpop.f32.mrb[0].mxu0
    %v551 = vadd.f32 0.0, %v550
    %v552 = vpop.f32.mrb[0].mxu0
    %v553 = vadd.f32 0.0, %v552
    %v554 = vpop.f32.mrb[0].mxu0
    %v555 = vadd.f32 0.0, %v554
    %v556 = vpop.f32.mrb[0].mxu0
    %v557 = vadd.f32 0.0, %v556
    %558 = vmatprep.mubr.bf16.mxu0 0
    %559 = vmatmul.mubr.bf16.gmra.mrb[0].mxu0 %v244
    %v560 = vpop.f32.mrb[0].mxu0
    %v561 = vadd.f32 0.0, %v560
    %v562 = vpop.f32.mrb[0].mxu0
    %v563 = vadd.f32 0.0, %v562
    %v564 = vpop.f32.mrb[0].mxu0
    %v565 = vadd.f32 0.0, %v564
    %v566 = vpop.f32.mrb[0].mxu0
    %v567 = vadd.f32 0.0, %v566
    %568 = vmatprep.mubr.bf16.mxu0 0
    %569 = vmatmul.mubr.bf16.gmra.mrb[0].mxu0 %v247
    %v570 = vpop.f32.mrb[0].mxu0
    %v571 = vadd.f32 0.0, %v570
    %v572 = vpop.f32.mrb[0].mxu0
    %v573 = vadd.f32 0.0, %v572
    %v574 = vpop.f32.mrb[0].mxu0
    %v575 = vadd.f32 0.0, %v574
    %v576 = vpop.f32.mrb[0].mxu0
    %v577 = vadd.f32 0.0, %v576
    %578 = vmatprep.mubr.bf16.mxu0 0
    %579 = vmatmul.mubr.bf16.gmra.mrb[0].mxu0 %v250
    %v580 = vpop.f32.mrb[0].mxu0
    %v581 = vadd.f32 0.0, %v580
    %v582 = vpop.f32.mrb[0].mxu0
    %v583 = vadd.f32 0.0, %v582
    %v584 = vpop.f32.mrb[0].mxu0
    %v585 = vadd.f32 0.0, %v584
    %v586 = vpop.f32.mrb[0].mxu0
    %v587 = vadd.f32 0.0, %v586
    %588 = vmatprep.mubr.bf16.mxu0 0
    %589 = vmatmul.mubr.bf16.gmra.mrb[0].mxu0 %v253
    %v590 = vpop.f32.mrb[0].mxu0
    %v591 = vadd.f32 0.0, %v590
    %v592 = vpop.f32.mrb[0].mxu0
    %v593 = vadd.f32 0.0, %v592
    %v594 = vpop.f32.mrb[0].mxu0
    %v595 = vadd.f32 0.0, %v594
    %v596 = vpop.f32.mrb[0].mxu0
    %v597 = vadd.f32 0.0, %v596
    %598 = vmatprep.mubr.bf16.mxu0 0
    %599 = vmatmul.mubr.bf16.gmra.mrb[0].mxu0 %v256
    %v600 = vpop.f32.mrb[0].mxu0
    %v601 = vadd.f32 0.0, %v600
    %v602 = vpop.f32.mrb[0].mxu0
    %v603 = vadd.f32 0.0, %v602
    %v604 = vpop.f32.mrb[0].mxu0
    %v605 = vadd.f32 0.0, %v604
    %v606 = vpop.f32.mrb[0].mxu0
    %v607 = vadd.f32 0.0, %v606
    %608 = vmatprep.mubr.bf16.mxu0 0
    %609 = vmatmul.mubr.bf16.gmra.mrb[0].mxu0 %v259
    %v610 = vpop.f32.mrb[0].mxu0
    %v611 = vadd.f32 0.0, %v610
    %v612 = vpop.f32.mrb[0].mxu0
    %v613 = vadd.f32 0.0, %v612
    %v614 = vpop.f32.mrb[0].mxu0
    %v615 = vadd.f32 0.0, %v614
    %v616 = vpop.f32.mrb[0].mxu0
    %v617 = vadd.f32 0.0, %v616
    %618 = vmatprep.mubr.bf16.mxu0 0
    %619 = vmatmul.mubr.bf16.gmra.mrb[0].mxu0 %v262
    %v620 = vpop.f32.mrb[0].mxu0
    %v621 = vadd.f32 0.0, %v620
    %v622 = vpop.f32.mrb[0].mxu0
    %v623 = vadd.f32 0.0, %v622
    %v624 = vpop.f32.mrb[0].mxu0
    %v625 = vadd.f32 0.0, %v624
    %v626 = vpop.f32.mrb[0].mxu0
    %v627 = vadd.f32 0.0, %v626
    %628 = vmatprep.mubr.bf16.mxu0 0
    %629 = vmatmul.mubr.bf16.gmra.mrb[0].mxu0 %v265
    %v630 = vpop.f32.mrb[0].mxu0
    %v631 = vadd.f32 0.0, %v630
    %v632 = vpop.f32.mrb[0].mxu0
    %v633 = vadd.f32 0.0, %v632
    %v634 = vpop.f32.mrb[0].mxu0
    %v635 = vadd.f32 0.0, %v634
    %v636 = vpop.f32.mrb[0].mxu0
    %v637 = vadd.f32 0.0, %v636
    %638 = vmatprep.mubr.bf16.mxu0 0
    %639 = vmatmul.mubr.bf16.gmra.mrb[0].mxu0 %v268
    %v640 = vpop.f32.mrb[0].mxu0
    %v641 = vadd.f32 0.0, %v640
    %v642 = vpop.f32.mrb[0].mxu0
    %v643 = vadd.f32 0.0, %v642
    %v644 = vpop.f32.mrb[0].mxu0
    %v645 = vadd.f32 0.0, %v644
    %v646 = vpop.f32.mrb[0].mxu0
    %v647 = vadd.f32 0.0, %v646
    %648 = vmatprep.mubr.bf16.mxu0 0
    %649 = vmatmul.mubr.bf16.gmra.mrb[0].mxu0 %v271
    %v650 = vpop.f32.mrb[0].mxu0
    %v651 = vadd.f32 0.0, %v650
    %v652 = vpop.f32.mrb[0].mxu0
    %v653 = vadd.f32 0.0, %v652
    %v654 = vpop.f32.mrb[0].mxu0
    %v655 = vadd.f32 0.0, %v654
    %v656 = vpop.f32.mrb[0].mxu0
    %v657 = vadd.f32 0.0, %v656
    %658 = vdwg.mxu0
    %v659 = vld [vmem:[%s2] sm:$0xff]
    %v660 = vld [vmem:[%s2 + $0x8] sm:$0xff]
    %v661 = vld [vmem:[%s2 + $0x10] sm:$0xff]
    %v662 = vld [vmem:[%s2 + $0x18] sm:$0xff]
    %v663 = vld [vmem:[%s2 + $0x20] sm:$0xff]
    %v664 = vld [vmem:[%s2 + $0x28] sm:$0xff]
    %v665 = vld [vmem:[%s2 + $0x30] sm:$0xff]
    %v666 = vld [vmem:[%s2 + $0x38] sm:$0xff]
    %v667 = vld [vmem:[%s2 + $0x40] sm:$0xff]
    %v668 = vld [vmem:[%s2 + $0x48] sm:$0xff]
    %v669 = vld [vmem:[%s2 + $0x50] sm:$0xff]
    %v670 = vld [vmem:[%s2 + $0x58] sm:$0xff]
    %v671 = vld [vmem:[%s2 + $0x60] sm:$0xff]
    %v672 = vld [vmem:[%s2 + $0x68] sm:$0xff]
    %v673 = vld [vmem:[%s2 + $0x70] sm:$0xff]
    %v674 = vld [vmem:[%s2 + $0x78] sm:$0xff]
    %v675 = vld [vmem:[%s2 + $0x80] sm:$0xff]
    %v676 = vld [vmem:[%s2 + $0x88] sm:$0xff]
    %v677 = vld [vmem:[%s2 + $0x90] sm:$0xff]
    %v678 = vld [vmem:[%s2 + $0x98] sm:$0xff]
    %v679 = vld [vmem:[%s2 + $0xa0] sm:$0xff]
    %v680 = vld [vmem:[%s2 + $0xa8] sm:$0xff]
    %v681 = vld [vmem:[%s2 + $0xb0] sm:$0xff]
    %v682 = vld [vmem:[%s2 + $0xb8] sm:$0xff]
    %v683 = vld [vmem:[%s2 + $0xc0] sm:$0xff]
    %v684 = vld [vmem:[%s2 + $0xc8] sm:$0xff]
    %v685 = vld [vmem:[%s2 + $0xd0] sm:$0xff]
    %v686 = vld [vmem:[%s2 + $0xd8] sm:$0xff]
    %v687 = vld [vmem:[%s2 + $0xe0] sm:$0xff]
    %v688 = vld [vmem:[%s2 + $0xe8] sm:$0xff]
    %v689 = vld [vmem:[%s2 + $0xf0] sm:$0xff]
    %v690 = vld [vmem:[%s2 + $0xf8] sm:$0xff]
    %692 = vset.pattern.permute.xlu0 0
    %693 = vperm.xlu0 %692, %v659
    %v694 = vpop.permute.xlu0 %693
    %697 = vset.pattern.permute.xlu0 0
    %698 = vperm.xlu0 %697, %v660
    %v699 = vpop.permute.xlu0 %698
    %702 = vset.pattern.permute.xlu0 0
    %703 = vperm.xlu0 %702, %v661
    %v704 = vpop.permute.xlu0 %703
    %707 = vset.pattern.permute.xlu0 0
    %708 = vperm.xlu0 %707, %v662
    %v709 = vpop.permute.xlu0 %708
    %712 = vset.pattern.permute.xlu0 0
    %713 = vperm.xlu0 %712, %v663
    %v714 = vpop.permute.xlu0 %713
    %717 = vset.pattern.permute.xlu0 0
    %718 = vperm.xlu0 %717, %v664
    %v719 = vpop.permute.xlu0 %718
    %722 = vset.pattern.permute.xlu0 0
    %723 = vperm.xlu0 %722, %v665
    %v724 = vpop.permute.xlu0 %723
    %727 = vset.pattern.permute.xlu0 0
    %728 = vperm.xlu0 %727, %v666
    %v729 = vpop.permute.xlu0 %728
    %732 = vset.pattern.permute.xlu0 0
    %733 = vperm.xlu0 %732, %v667
    %v734 = vpop.permute.xlu0 %733
    %737 = vset.pattern.permute.xlu0 0
    %738 = vperm.xlu0 %737, %v668
    %v739 = vpop.permute.xlu0 %738
    %742 = vset.pattern.permute.xlu0 0
    %743 = vperm.xlu0 %742, %v669
    %v744 = vpop.permute.xlu0 %743
    %747 = vset.pattern.permute.xlu0 0
    %748 = vperm.xlu0 %747, %v670
    %v749 = vpop.permute.xlu0 %748
    %752 = vset.pattern.permute.xlu0 0
    %753 = vperm.xlu0 %752, %v671
    %v754 = vpop.permute.xlu0 %753
    %757 = vset.pattern.permute.xlu0 0
    %758 = vperm.xlu0 %757, %v672
    %v759 = vpop.permute.xlu0 %758
    %762 = vset.pattern.permute.xlu0 0
    %763 = vperm.xlu0 %762, %v673
    %v764 = vpop.permute.xlu0 %763
    %767 = vset.pattern.permute.xlu0 0
    %768 = vperm.xlu0 %767, %v674
    %v769 = vpop.permute.xlu0 %768
    %772 = vset.pattern.permute.xlu0 0
    %773 = vperm.xlu0 %772, %v675
    %v774 = vpop.permute.xlu0 %773
    %777 = vset.pattern.permute.xlu0 0
    %778 = vperm.xlu0 %777, %v676
    %v779 = vpop.permute.xlu0 %778
    %782 = vset.pattern.permute.xlu0 0
    %783 = vperm.xlu0 %782, %v677
    %v784 = vpop.permute.xlu0 %783
    %787 = vset.pattern.permute.xlu0 0
    %788 = vperm.xlu0 %787, %v678
    %v789 = vpop.permute.xlu0 %788
    %792 = vset.pattern.permute.xlu0 0
    %793 = vperm.xlu0 %792, %v679
    %v794 = vpop.permute.xlu0 %793
    %797 = vset.pattern.permute.xlu0 0
    %798 = vperm.xlu0 %797, %v680
    %v799 = vpop.permute.xlu0 %798
    %802 = vset.pattern.permute.xlu0 0
    %803 = vperm.xlu0 %802, %v681
    %v804 = vpop.permute.xlu0 %803
    %807 = vset.pattern.permute.xlu0 0
    %808 = vperm.xlu0 %807, %v682
    %v809 = vpop.permute.xlu0 %808
    %812 = vset.pattern.permute.xlu0 0
    %813 = vperm.xlu0 %812, %v683
    %v814 = vpop.permute.xlu0 %813
    %817 = vset.pattern.permute.xlu0 0
    %818 = vperm.xlu0 %817, %v684
    %v819 = vpop.permute.xlu0 %818
    %822 = vset.pattern.permute.xlu0 0
    %823 = vperm.xlu0 %822, %v685
    %v824 = vpop.permute.xlu0 %823
    %827 = vset.pattern.permute.xlu0 0
    %828 = vperm.xlu0 %827, %v686
    %v829 = vpop.permute.xlu0 %828
    %832 = vset.pattern.permute.xlu0 0
    %833 = vperm.xlu0 %832, %v687
    %v834 = vpop.permute.xlu0 %833
    %837 = vset.pattern.permute.xlu0 0
    %838 = vperm.xlu0 %837, %v688
    %v839 = vpop.permute.xlu0 %838
    %842 = vset.pattern.permute.xlu0 0
    %843 = vperm.xlu0 %842, %v689
    %v844 = vpop.permute.xlu0 %843
    %847 = vset.pattern.permute.xlu0 0
    %848 = vperm.xlu0 %847, %v690
    %v849 = vpop.permute.xlu0 %848
    %v851 = vmul.f32 %v308, %v694
    %v852 = vmul.f32 %v310, %v694
    %v853 = vmul.f32 %v501, %v694
    %v854 = vmul.f32 %v503, %v694
    %v855 = vmul.f32 %v312, %v699
    %v856 = vmul.f32 %v314, %v699
    %v857 = vmul.f32 %v505, %v699
    %v858 = vmul.f32 %v507, %v699
    %v859 = vmul.f32 %v318, %v704
    %v860 = vmul.f32 %v320, %v704
    %v861 = vmul.f32 %v511, %v704
    %v862 = vmul.f32 %v513, %v704
    %v863 = vmul.f32 %v322, %v709
    %v864 = vmul.f32 %v324, %v709
    %v865 = vmul.f32 %v515, %v709
    %v866 = vmul.f32 %v517, %v709
    %v867 = vmul.f32 %v328, %v714
    %v868 = vmul.f32 %v330, %v714
    %v869 = vmul.f32 %v521, %v714
    %v870 = vmul.f32 %v523, %v714
    %v871 = vmul.f32 %v332, %v719
    %v872 = vmul.f32 %v334, %v719
    %v873 = vmul.f32 %v525, %v719
    %v874 = vmul.f32 %v527, %v719
    %v875 = vmul.f32 %v338, %v724
    %v876 = vmul.f32 %v340, %v724
    %v877 = vmul.f32 %v531, %v724
    %v878 = vmul.f32 %v533, %v724
    %v879 = vmul.f32 %v342, %v729
    %v880 = vmul.f32 %v344, %v729
    %v881 = vmul.f32 %v535, %v729
    %v882 = vmul.f32 %v537, %v729
    %v883 = vmul.f32 %v348, %v734
    %v884 = vmul.f32 %v350, %v734
    %v885 = vmul.f32 %v541, %v734
    %v886 = vmul.f32 %v543, %v734
    %v887 = vmul.f32 %v352, %v739
    %v888 = vmul.f32 %v354, %v739
    %v889 = vmul.f32 %v545, %v739
    %v890 = vmul.f32 %v547, %v739
    %v891 = vmul.f32 %v358, %v744
    %v892 = vmul.f32 %v360, %v744
    %v893 = vmul.f32 %v551, %v744
    %v894 = vmul.f32 %v553, %v744
    %v895 = vmul.f32 %v362, %v749
    %v896 = vmul.f32 %v364, %v749
    %v897 = vmul.f32 %v555, %v749
    %v898 = vmul.f32 %v557, %v749
    %v899 = vmul.f32 %v368, %v754
    %v900 = vmul.f32 %v370, %v754
    %v901 = vmul.f32 %v561, %v754
    %v902 = vmul.f32 %v563, %v754
    %v903 = vmul.f32 %v372, %v759
    %v904 = vmul.f32 %v374, %v759
    %v905 = vmul.f32 %v565, %v759
    %v906 = vmul.f32 %v567, %v759
    %v907 = vmul.f32 %v378, %v764
    %v908 = vmul.f32 %v380, %v764
    %v909 = vmul.f32 %v571, %v764
    %v910 = vmul.f32 %v573, %v764
    %v911 = vmul.f32 %v382, %v769
    %v912 = vmul.f32 %v384, %v769
    %v913 = vmul.f32 %v575, %v769
    %v914 = vmul.f32 %v577, %v769
    %v915 = vmul.f32 %v388, %v774
    %v916 = vmul.f32 %v390, %v774
    %v917 = vmul.f32 %v581, %v774
    %v918 = vmul.f32 %v583, %v774
    %v919 = vmul.f32 %v392, %v779
    %v920 = vmul.f32 %v394, %v779
    %v921 = vmul.f32 %v585, %v779
    %v922 = vmul.f32 %v587, %v779
    %v923 = vmul.f32 %v398, %v784
    %v924 = vmul.f32 %v400, %v784
    %v925 = vmul.f32 %v591, %v784
    %v926 = vmul.f32 %v593, %v784
    %v927 = vmul.f32 %v402, %v789
    %v928 = vmul.f32 %v404, %v789
    %v929 = vmul.f32 %v595, %v789
    %v930 = vmul.f32 %v597, %v789
    %v931 = vmul.f32 %v408, %v794
    %v932 = vmul.f32 %v410, %v794
    %v933 = vmul.f32 %v601, %v794
    %v934 = vmul.f32 %v603, %v794
    %v935 = vmul.f32 %v412, %v799
    %v936 = vmul.f32 %v414, %v799
    %v937 = vmul.f32 %v605, %v799
    %v938 = vmul.f32 %v607, %v799
    %v939 = vmul.f32 %v418, %v804
    %v940 = vmul.f32 %v420, %v804
    %v941 = vmul.f32 %v611, %v804
    %v942 = vmul.f32 %v613, %v804
    %v943 = vmul.f32 %v422, %v809
    %v944 = vmul.f32 %v424, %v809
    %v945 = vmul.f32 %v615, %v809
    %v946 = vmul.f32 %v617, %v809
    %v947 = vmul.f32 %v428, %v814
    %v948 = vmul.f32 %v430, %v814
    %v949 = vmul.f32 %v621, %v814
    %v950 = vmul.f32 %v623, %v814
    %v951 = vmul.f32 %v432, %v819
    %v952 = vmul.f32 %v434, %v819
    %v953 = vmul.f32 %v625, %v819
    %v954 = vmul.f32 %v627, %v819
    %v955 = vmul.f32 %v438, %v824
    %v956 = vmul.f32 %v440, %v824
    %v957 = vmul.f32 %v631, %v824
    %v958 = vmul.f32 %v633, %v824
    %v959 = vmul.f32 %v442, %v829
    %v960 = vmul.f32 %v444, %v829
    %v961 = vmul.f32 %v635, %v829
    %v962 = vmul.f32 %v637, %v829
    %v963 = vmul.f32 %v448, %v834
    %v964 = vmul.f32 %v450, %v834
    %v965 = vmul.f32 %v641, %v834
    %v966 = vmul.f32 %v643, %v834
    %v967 = vmul.f32 %v452, %v839
    %v968 = vmul.f32 %v454, %v839
    %v969 = vmul.f32 %v645, %v839
    %v970 = vmul.f32 %v647, %v839
    %v971 = vmul.f32 %v458, %v844
    %v972 = vmul.f32 %v460, %v844
    %v973 = vmul.f32 %v651, %v844
    %v974 = vmul.f32 %v653, %v844
    %v975 = vmul.f32 %v462, %v849
    %v976 = vmul.f32 %v464, %v849
    %v977 = vmul.f32 %v655, %v849
    %v978 = vmul.f32 %v657, %v849
    %v979 = vpack.c.bf16 %v855, %v851
    %v980 = vpack.c.bf16 %v856, %v852
    %v981 = vpack.c.bf16 %v857, %v853
    %v982 = vpack.c.bf16 %v858, %v854
    %v983 = vpack.c.bf16 %v863, %v859
    %v984 = vpack.c.bf16 %v864, %v860
    %v985 = vpack.c.bf16 %v865, %v861
    %v986 = vpack.c.bf16 %v866, %v862
    %v987 = vpack.c.bf16 %v871, %v867
    %v988 = vpack.c.bf16 %v872, %v868
    %v989 = vpack.c.bf16 %v873, %v869
    %v990 = vpack.c.bf16 %v874, %v870
    %v991 = vpack.c.bf16 %v879, %v875
    %v992 = vpack.c.bf16 %v880, %v876
    %v993 = vpack.c.bf16 %v881, %v877
    %v994 = vpack.c.bf16 %v882, %v878
    %v995 = vpack.c.bf16 %v887, %v883
    %v996 = vpack.c.bf16 %v888, %v884
    %v997 = vpack.c.bf16 %v889, %v885
    %v998 = vpack.c.bf16 %v890, %v886
    %v999 = vpack.c.bf16 %v895, %v891
    %v1000 = vpack.c.bf16 %v896, %v892
    %v1001 = vpack.c.bf16 %v897, %v893
    %v1002 = vpack.c.bf16 %v898, %v894
    %v1003 = vpack.c.bf16 %v903, %v899
    %v1004 = vpack.c.bf16 %v904, %v900
    %v1005 = vpack.c.bf16 %v905, %v901
    %v1006 = vpack.c.bf16 %v906, %v902
    %v1007 = vpack.c.bf16 %v911, %v907
    %v1008 = vpack.c.bf16 %v912, %v908
    %v1009 = vpack.c.bf16 %v913, %v909
    %v1010 = vpack.c.bf16 %v914, %v910
    %v1011 = vpack.c.bf16 %v919, %v915
    %v1012 = vpack.c.bf16 %v920, %v916
    %v1013 = vpack.c.bf16 %v921, %v917
    %v1014 = vpack.c.bf16 %v922, %v918
    %v1015 = vpack.c.bf16 %v927, %v923
    %v1016 = vpack.c.bf16 %v928, %v924
    %v1017 = vpack.c.bf16 %v929, %v925
    %v1018 = vpack.c.bf16 %v930, %v926
    %v1019 = vpack.c.bf16 %v935, %v931
    %v1020 = vpack.c.bf16 %v936, %v932
    %v1021 = vpack.c.bf16 %v937, %v933
    %v1022 = vpack.c.bf16 %v938, %v934
    %v1023 = vpack.c.bf16 %v943, %v939
    %v1024 = vpack.c.bf16 %v944, %v940
    %v1025 = vpack.c.bf16 %v945, %v941
    %v1026 = vpack.c.bf16 %v946, %v942
    %v1027 = vpack.c.bf16 %v951, %v947
    %v1028 = vpack.c.bf16 %v952, %v948
    %v1029 = vpack.c.bf16 %v953, %v949
    %v1030 = vpack.c.bf16 %v954, %v950
    %v1031 = vpack.c.bf16 %v959, %v955
    %v1032 = vpack.c.bf16 %v960, %v956
    %v1033 = vpack.c.bf16 %v961, %v957
    %v1034 = vpack.c.bf16 %v962, %v958
    %v1035 = vpack.c.bf16 %v967, %v963
    %v1036 = vpack.c.bf16 %v968, %v964
    %v1037 = vpack.c.bf16 %v969, %v965
    %v1038 = vpack.c.bf16 %v970, %v966
    %v1039 = vpack.c.bf16 %v975, %v971
    %v1040 = vpack.c.bf16 %v976, %v972
    %v1041 = vpack.c.bf16 %v977, %v973
    %v1042 = vpack.c.bf16 %v978, %v974
    %v1107 = vunpack.c.l.b16 %v979
    %v1108 = vunpack.c.l.b16 %v980
    %v1109 = vunpack.c.l.b16 %v981
    %v1110 = vunpack.c.l.b16 %v982
    %v1111 = vunpack.c.h.b16 %v979
    %v1112 = vunpack.c.h.b16 %v980
    %v1113 = vunpack.c.h.b16 %v981
    %v1114 = vunpack.c.h.b16 %v982
    %v1115 = vunpack.c.l.b16 %v983
    %v1116 = vunpack.c.l.b16 %v984
    %v1117 = vunpack.c.l.b16 %v985
    %v1118 = vunpack.c.l.b16 %v986
    %v1119 = vunpack.c.h.b16 %v983
    %v1120 = vunpack.c.h.b16 %v984
    %v1121 = vunpack.c.h.b16 %v985
    %v1122 = vunpack.c.h.b16 %v986
    %v1123 = vunpack.c.l.b16 %v987
    %v1124 = vunpack.c.l.b16 %v988
    %v1125 = vunpack.c.l.b16 %v989
    %v1126 = vunpack.c.l.b16 %v990
    %v1127 = vunpack.c.h.b16 %v987
    %v1128 = vunpack.c.h.b16 %v988
    %v1129 = vunpack.c.h.b16 %v989
    %v1130 = vunpack.c.h.b16 %v990
    %v1131 = vunpack.c.l.b16 %v991
    %v1132 = vunpack.c.l.b16 %v992
    %v1133 = vunpack.c.l.b16 %v993
    %v1134 = vunpack.c.l.b16 %v994
    %v1135 = vunpack.c.h.b16 %v991
    %v1136 = vunpack.c.h.b16 %v992
    %v1137 = vunpack.c.h.b16 %v993
    %v1138 = vunpack.c.h.b16 %v994
    %v1139 = vunpack.c.l.b16 %v995
    %v1140 = vunpack.c.l.b16 %v996
    %v1141 = vunpack.c.l.b16 %v997
    %v1142 = vunpack.c.l.b16 %v998
    %v1143 = vunpack.c.h.b16 %v995
    %v1144 = vunpack.c.h.b16 %v996
    %v1145 = vunpack.c.h.b16 %v997
    %v1146 = vunpack.c.h.b16 %v998
    %v1147 = vunpack.c.l.b16 %v999
    %v1148 = vunpack.c.l.b16 %v1000
    %v1149 = vunpack.c.l.b16 %v1001
    %v1150 = vunpack.c.l.b16 %v1002
    %v1151 = vunpack.c.h.b16 %v999
    %v1152 = vunpack.c.h.b16 %v1000
    %v1153 = vunpack.c.h.b16 %v1001
    %v1154 = vunpack.c.h.b16 %v1002
    %v1155 = vunpack.c.l.b16 %v1003
    %v1156 = vunpack.c.l.b16 %v1004
    %v1157 = vunpack.c.l.b16 %v1005
    %v1158 = vunpack.c.l.b16 %v1006
    %v1159 = vunpack.c.h.b16 %v1003
    %v1160 = vunpack.c.h.b16 %v1004
    %v1161 = vunpack.c.h.b16 %v1005
    %v1162 = vunpack.c.h.b16 %v1006
    %v1163 = vunpack.c.l.b16 %v1007
    %v1164 = vunpack.c.l.b16 %v1008
    %v1165 = vunpack.c.l.b16 %v1009
    %v1166 = vunpack.c.l.b16 %v1010
    %v1167 = vunpack.c.h.b16 %v1007
    %v1168 = vunpack.c.h.b16 %v1008
    %v1169 = vunpack.c.h.b16 %v1009
    %v1170 = vunpack.c.h.b16 %v1010
    %v1171 = vunpack.c.l.b16 %v1011
    %v1172 = vunpack.c.l.b16 %v1012
    %v1173 = vunpack.c.l.b16 %v1013
    %v1174 = vunpack.c.l.b16 %v1014
    %v1175 = vunpack.c.h.b16 %v1011
    %v1176 = vunpack.c.h.b16 %v1012
    %v1177 = vunpack.c.h.b16 %v1013
    %v1178 = vunpack.c.h.b16 %v1014
    %v1179 = vunpack.c.l.b16 %v1015
    %v1180 = vunpack.c.l.b16 %v1016
    %v1181 = vunpack.c.l.b16 %v1017
    %v1182 = vunpack.c.l.b16 %v1018
    %v1183 = vunpack.c.h.b16 %v1015
    %v1184 = vunpack.c.h.b16 %v1016
    %v1185 = vunpack.c.h.b16 %v1017
    %v1186 = vunpack.c.h.b16 %v1018
    %v1187 = vunpack.c.l.b16 %v1019
    %v1188 = vunpack.c.l.b16 %v1020
    %v1189 = vunpack.c.l.b16 %v1021
    %v1190 = vunpack.c.l.b16 %v1022
    %v1191 = vunpack.c.h.b16 %v1019
    %v1192 = vunpack.c.h.b16 %v1020
    %v1193 = vunpack.c.h.b16 %v1021
    %v1194 = vunpack.c.h.b16 %v1022
    %v1195 = vunpack.c.l.b16 %v1023
    %v1196 = vunpack.c.l.b16 %v1024
    %v1197 = vunpack.c.l.b16 %v1025
    %v1198 = vunpack.c.l.b16 %v1026
    %v1199 = vunpack.c.h.b16 %v1023
    %v1200 = vunpack.c.h.b16 %v1024
    %v1201 = vunpack.c.h.b16 %v1025
    %v1202 = vunpack.c.h.b16 %v1026
    %v1203 = vunpack.c.l.b16 %v1027
    %v1204 = vunpack.c.l.b16 %v1028
    %v1205 = vunpack.c.l.b16 %v1029
    %v1206 = vunpack.c.l.b16 %v1030
    %v1207 = vunpack.c.h.b16 %v1027
    %v1208 = vunpack.c.h.b16 %v1028
    %v1209 = vunpack.c.h.b16 %v1029
    %v1210 = vunpack.c.h.b16 %v1030
    %v1211 = vunpack.c.l.b16 %v1031
    %v1212 = vunpack.c.l.b16 %v1032
    %v1213 = vunpack.c.l.b16 %v1033
    %v1214 = vunpack.c.l.b16 %v1034
    %v1215 = vunpack.c.h.b16 %v1031
    %v1216 = vunpack.c.h.b16 %v1032
    %v1217 = vunpack.c.h.b16 %v1033
    %v1218 = vunpack.c.h.b16 %v1034
    %v1219 = vunpack.c.l.b16 %v1035
    %v1220 = vunpack.c.l.b16 %v1036
    %v1221 = vunpack.c.l.b16 %v1037
    %v1222 = vunpack.c.l.b16 %v1038
    %v1223 = vunpack.c.h.b16 %v1035
    %v1224 = vunpack.c.h.b16 %v1036
    %v1225 = vunpack.c.h.b16 %v1037
    %v1226 = vunpack.c.h.b16 %v1038
    %v1227 = vunpack.c.l.b16 %v1039
    %v1228 = vunpack.c.l.b16 %v1040
    %v1229 = vunpack.c.l.b16 %v1041
    %v1230 = vunpack.c.l.b16 %v1042
    %v1231 = vunpack.c.h.b16 %v1039
    %v1232 = vunpack.c.h.b16 %v1040
    %v1233 = vunpack.c.h.b16 %v1041
    %v1234 = vunpack.c.h.b16 %v1042
    %v1235 = vpack.c.b16 %v1108, %v1107
    %v1236 = vpack.c.b16 %v1110, %v1109
    %v1237 = vpack.c.b16 %v1112, %v1111
    %v1238 = vpack.c.b16 %v1114, %v1113
    %v1239 = vpack.c.b16 %v1116, %v1115
    %v1240 = vpack.c.b16 %v1118, %v1117
    %v1241 = vpack.c.b16 %v1120, %v1119
    %v1242 = vpack.c.b16 %v1122, %v1121
    %v1243 = vpack.c.b16 %v1124, %v1123
    %v1244 = vpack.c.b16 %v1126, %v1125
    %v1245 = vpack.c.b16 %v1128, %v1127
    %v1246 = vpack.c.b16 %v1130, %v1129
    %v1247 = vpack.c.b16 %v1132, %v1131
    %v1248 = vpack.c.b16 %v1134, %v1133
    %v1249 = vpack.c.b16 %v1136, %v1135
    %v1250 = vpack.c.b16 %v1138, %v1137
    %v1251 = vpack.c.b16 %v1140, %v1139
    %v1252 = vpack.c.b16 %v1142, %v1141
    %v1253 = vpack.c.b16 %v1144, %v1143
    %v1254 = vpack.c.b16 %v1146, %v1145
    %v1255 = vpack.c.b16 %v1148, %v1147
    %v1256 = vpack.c.b16 %v1150, %v1149
    %v1257 = vpack.c.b16 %v1152, %v1151
    %v1258 = vpack.c.b16 %v1154, %v1153
    %v1259 = vpack.c.b16 %v1156, %v1155
    %v1260 = vpack.c.b16 %v1158, %v1157
    %v1261 = vpack.c.b16 %v1160, %v1159
    %v1262 = vpack.c.b16 %v1162, %v1161
    %v1263 = vpack.c.b16 %v1164, %v1163
    %v1264 = vpack.c.b16 %v1166, %v1165
    %v1265 = vpack.c.b16 %v1168, %v1167
    %v1266 = vpack.c.b16 %v1170, %v1169
    %v1267 = vpack.c.b16 %v1172, %v1171
    %v1268 = vpack.c.b16 %v1174, %v1173
    %v1269 = vpack.c.b16 %v1176, %v1175
    %v1270 = vpack.c.b16 %v1178, %v1177
    %v1271 = vpack.c.b16 %v1180, %v1179
    %v1272 = vpack.c.b16 %v1182, %v1181
    %v1273 = vpack.c.b16 %v1184, %v1183
    %v1274 = vpack.c.b16 %v1186, %v1185
    %v1275 = vpack.c.b16 %v1188, %v1187
    %v1276 = vpack.c.b16 %v1190, %v1189
    %v1277 = vpack.c.b16 %v1192, %v1191
    %v1278 = vpack.c.b16 %v1194, %v1193
    %v1279 = vpack.c.b16 %v1196, %v1195
    %v1280 = vpack.c.b16 %v1198, %v1197
    %v1281 = vpack.c.b16 %v1200, %v1199
    %v1282 = vpack.c.b16 %v1202, %v1201
    %v1283 = vpack.c.b16 %v1204, %v1203
    %v1284 = vpack.c.b16 %v1206, %v1205
    %v1285 = vpack.c.b16 %v1208, %v1207
    %v1286 = vpack.c.b16 %v1210, %v1209
    %v1287 = vpack.c.b16 %v1212, %v1211
    %v1288 = vpack.c.b16 %v1214, %v1213
    %v1289 = vpack.c.b16 %v1216, %v1215
    %v1290 = vpack.c.b16 %v1218, %v1217
    %v1291 = vpack.c.b16 %v1220, %v1219
    %v1292 = vpack.c.b16 %v1222, %v1221
    %v1293 = vpack.c.b16 %v1224, %v1223
    %v1294 = vpack.c.b16 %v1226, %v1225
    %v1295 = vpack.c.b16 %v1228, %v1227
    %v1296 = vpack.c.b16 %v1230, %v1229
    %v1297 = vpack.c.b16 %v1232, %v1231
    %v1298 = vpack.c.b16 %v1234, %v1233
    %1363 = vst [vmem:[#allocation2] sm:$0xff] %v1235
    %1364 = vst [vmem:[#allocation2 + $0x8] sm:$0xff] %v1236
    %1365 = vst [vmem:[#allocation2 + $0x10] sm:$0xff] %v1237
    %1366 = vst [vmem:[#allocation2 + $0x18] sm:$0xff] %v1238
    %1367 = vst [vmem:[#allocation2 + $0x20] sm:$0xff] %v1239
    %1368 = vst [vmem:[#allocation2 + $0x28] sm:$0xff] %v1240
    %1369 = vst [vmem:[#allocation2 + $0x30] sm:$0xff] %v1241
    %1370 = vst [vmem:[#allocation2 + $0x38] sm:$0xff] %v1242
    %1371 = vst [vmem:[#allocation2 + $0x40] sm:$0xff] %v1243
    %1372 = vst [vmem:[#allocation2 + $0x48] sm:$0xff] %v1244
    %1373 = vst [vmem:[#allocation2 + $0x50] sm:$0xff] %v1245
    %1374 = vst [vmem:[#allocation2 + $0x58] sm:$0xff] %v1246
    %1375 = vst [vmem:[#allocation2 + $0x60] sm:$0xff] %v1247
    %1376 = vst [vmem:[#allocation2 + $0x68] sm:$0xff] %v1248
    %1377 = vst [vmem:[#allocation2 + $0x70] sm:$0xff] %v1249
    %1378 = vst [vmem:[#allocation2 + $0x78] sm:$0xff] %v1250
    %1379 = vst [vmem:[#allocation2 + $0x80] sm:$0xff] %v1251
    %1380 = vst [vmem:[#allocation2 + $0x88] sm:$0xff] %v1252
    %1381 = vst [vmem:[#allocation2 + $0x90] sm:$0xff] %v1253
    %1382 = vst [vmem:[#allocation2 + $0x98] sm:$0xff] %v1254
    %1383 = vst [vmem:[#allocation2 + $0xa0] sm:$0xff] %v1255
    %1384 = vst [vmem:[#allocation2 + $0xa8] sm:$0xff] %v1256
    %1385 = vst [vmem:[#allocation2 + $0xb0] sm:$0xff] %v1257
    %1386 = vst [vmem:[#allocation2 + $0xb8] sm:$0xff] %v1258
    %1387 = vst [vmem:[#allocation2 + $0xc0] sm:$0xff] %v1259
    %1388 = vst [vmem:[#allocation2 + $0xc8] sm:$0xff] %v1260
    %1389 = vst [vmem:[#allocation2 + $0xd0] sm:$0xff] %v1261
    %1390 = vst [vmem:[#allocation2 + $0xd8] sm:$0xff] %v1262
    %1391 = vst [vmem:[#allocation2 + $0xe0] sm:$0xff] %v1263
    %1392 = vst [vmem:[#allocation2 + $0xe8] sm:$0xff] %v1264
    %1393 = vst [vmem:[#allocation2 + $0xf0] sm:$0xff] %v1265
    %1394 = vst [vmem:[#allocation2 + $0xf8] sm:$0xff] %v1266
    %1395 = vst [vmem:[#allocation2 + $0x100] sm:$0xff] %v1267
    %1396 = vst [vmem:[#allocation2 + $0x108] sm:$0xff] %v1268
    %1397 = vst [vmem:[#allocation2 + $0x110] sm:$0xff] %v1269
    %1398 = vst [vmem:[#allocation2 + $0x118] sm:$0xff] %v1270
    %1399 = vst [vmem:[#allocation2 + $0x120] sm:$0xff] %v1271
    %1400 = vst [vmem:[#allocation2 + $0x128] sm:$0xff] %v1272
    %1401 = vst [vmem:[#allocation2 + $0x130] sm:$0xff] %v1273
    %1402 = vst [vmem:[#allocation2 + $0x138] sm:$0xff] %v1274
    %1403 = vst [vmem:[#allocation2 + $0x140] sm:$0xff] %v1275
    %1404 = vst [vmem:[#allocation2 + $0x148] sm:$0xff] %v1276
    %1405 = vst [vmem:[#allocation2 + $0x150] sm:$0xff] %v1277
    %1406 = vst [vmem:[#allocation2 + $0x158] sm:$0xff] %v1278
    %1407 = vst [vmem:[#allocation2 + $0x160] sm:$0xff] %v1279
    %1408 = vst [vmem:[#allocation2 + $0x168] sm:$0xff] %v1280
    %1409 = vst [vmem:[#allocation2 + $0x170] sm:$0xff] %v1281
    %1410 = vst [vmem:[#allocation2 + $0x178] sm:$0xff] %v1282
    %1411 = vst [vmem:[#allocation2 + $0x180] sm:$0xff] %v1283
    %1412 = vst [vmem:[#allocation2 + $0x188] sm:$0xff] %v1284
    %1413 = vst [vmem:[#allocation2 + $0x190] sm:$0xff] %v1285
    %1414 = vst [vmem:[#allocation2 + $0x198] sm:$0xff] %v1286
    %1415 = vst [vmem:[#allocation2 + $0x1a0] sm:$0xff] %v1287
    %1416 = vst [vmem:[#allocation2 + $0x1a8] sm:$0xff] %v1288
    %1417 = vst [vmem:[#allocation2 + $0x1b0] sm:$0xff] %v1289
    %1418 = vst [vmem:[#allocation2 + $0x1b8] sm:$0xff] %v1290
    %1419 = vst [vmem:[#allocation2 + $0x1c0] sm:$0xff] %v1291
    %1420 = vst [vmem:[#allocation2 + $0x1c8] sm:$0xff] %v1292
    %1421 = vst [vmem:[#allocation2 + $0x1d0] sm:$0xff] %v1293
    %1422 = vst [vmem:[#allocation2 + $0x1d8] sm:$0xff] %v1294
    %1423 = vst [vmem:[#allocation2 + $0x1e0] sm:$0xff] %v1295
    %1424 = vst [vmem:[#allocation2 + $0x1e8] sm:$0xff] %v1296
    %1425 = vst [vmem:[#allocation2 + $0x1f0] sm:$0xff] %v1297
    %1426 = vst [vmem:[#allocation2 + $0x1f8] sm:$0xff] %v1298
    // Predicated region
    $region14: #{tpu_custom_call.1} parent=1 // pred_check
      _
    $region15: #{tpu_custom_call.1} parent=1 // pred_check_branch
      %1428 = sbr.rel (0) target = $region17
    $region16: #{tpu_custom_call.1} parent=1 // pred_region
      %s1430 = ssub.s32 8192, 8192
      %1431 = vsyncadd [#allocation3], %s1430
      %s1432 = sshll.u32 [#allocation2], 4
      %s1433 = int_to_ptr.vmem [resolvable:$true] %s1432
      %1438 = dma.vmem_to_hbm [thread:$0]  %s1433, 8192, %s3, [#allocation3], 256, 256, 16
    $region17: #{tpu_custom_call.1} parent=1 // pred_fallthru
      _
    // Predicated region
    $region18: #{tpu_custom_call.1} parent=1 // pred_check
      _
    $region19: #{tpu_custom_call.1} parent=1 // pred_check_branch
      %1440 = sbr.rel (0) target = $region21
    $region20: #{tpu_custom_call.1} parent=1 // pred_region
      %1441 = dma.done [#allocation3], 8192
    $region21: #{tpu_custom_call.1} parent=1 // pred_fallthru
      _
    %1442 = vsyncpa [#allocation3], 1

</llo_original>
